<compile_context>
chip_gen: v6e
topology: v6e:2x2x1
jax: 0.10.0
libtpu: 0.0.40
codegen_flags: <defaults>
</compile_context>

<pallas_src>
import jax
import jax.numpy as jnp
from jax.experimental import pallas as pl
from jax.experimental.pallas import tpu as pltpu


def mlp_kernel(x_ref, w1_ref, b1_ref, w2_ref, b2_ref, w3_ref, b3_ref, o_ref):
    # Fused 3-layer MLP: matmuls on the MXU, bias-add/ReLU on the VPU.
    x = x_ref[...]

    h1 = jnp.dot(x, w1_ref[...], preferred_element_type=jnp.float32) + b1_ref[...]
    h1 = jnp.maximum(h1, 0.0)  # ReLU

    h2 = jnp.dot(h1, w2_ref[...], preferred_element_type=jnp.float32) + b2_ref[...]
    h2 = jnp.maximum(h2, 0.0)  # ReLU

    out = jnp.dot(h2, w3_ref[...], preferred_element_type=jnp.float32) + b3_ref[...]
    o_ref[...] = out.astype(o_ref.dtype)


def _round_up(n, m):
    return ((n + m - 1) // m) * m


def mlp_forward(x, params, *, max_block_rows=512):
    """x: (B, ...) -> (B, out_channels). Flatten is plain-JAX glue."""
    w1, b1, w2, b2, w3, b3 = params
    B = x.shape[0]
    x2d = x.reshape(B, -1).astype(jnp.float32)  # nn.Flatten()
    in_features = x2d.shape[1]
    assert in_features == w1.shape[0], "in_channels mismatch after flatten"
    out_channels = w3.shape[1]

    # Batch tile: large enough to amortize ~0.35us/step grid overhead, small
    # enough that the double-buffered x tile fits comfortably in scoped VMEM
    # on every generation (~4 MiB per x-tile buffer).
    vmem_budget_rows = max(8, (4 * 1024 * 1024) // max(1, in_features * 4))
    tb = min(max_block_rows, vmem_budget_rows, _round_up(B, 8))
    tb = max(8, (tb // 8) * 8)  # multiple of 8 sublanes

    # Pad batch so every grid step sees a full tile (padded rows discarded).
    b_pad = _round_up(B, tb)
    if b_pad != B:
        x2d = jnp.pad(x2d, ((0, b_pad - B), (0, 0)))

    grid = (b_pad // tb,)
    const2d = lambda i: (0, 0)  # weights/biases: same block every step -> resident

    out = pl.pallas_call(
        mlp_kernel,
        out_shape=jax.ShapeDtypeStruct((b_pad, out_channels), jnp.float32),
        grid=grid,
        in_specs=[
            pl.BlockSpec((tb, in_features), lambda i: (i, 0)),  # streamed x tile
            pl.BlockSpec(w1.shape, const2d),
            pl.BlockSpec(b1.shape, const2d),
            pl.BlockSpec(w2.shape, const2d),
            pl.BlockSpec(b2.shape, const2d),
            pl.BlockSpec(w3.shape, const2d),
            pl.BlockSpec(b3.shape, const2d),
        ],
        out_specs=pl.BlockSpec((tb, out_channels), lambda i: (i, 0)),
        compiler_params=pltpu.CompilerParams(
            dimension_semantics=("parallel",),  # v7x megacore sharding
        ),
    )(x2d, w1, b1, w2, b2, w3, b3)

    return out[:B] if b_pad != B else out


def init_params(key, in_channels, out_channels=2):
    """Deterministic synthetic parameters matching the PyTorch module's shapes."""
    ks = jax.random.split(key, 6)
    dims = [(in_channels, 12), (12, 4), (4, out_channels)]
    params = []
    for i, (din, dout) in enumerate(dims):
        scale = 1.0 / jnp.sqrt(jnp.float32(din))
        w = jax.random.uniform(ks[2 * i], (din, dout), jnp.float32, -scale, scale)
        b = jax.random.uniform(ks[2 * i + 1], (1, dout), jnp.float32, -scale, scale)
        params += [w, b]
    return tuple(params)


def mlp_reference(x, params):
    w1, b1, w2, b2, w3, b3 = params
    x2d = x.reshape(x.shape[0], -1)
    h1 = jnp.maximum(x2d @ w1 + b1, 0.0)
    h2 = jnp.maximum(h1 @ w2 + b2, 0.0)
    return h2 @ w3 + b3


if __name__ == "__main__":
    key = jax.random.PRNGKey(0)
    k_x, k_p, k_x2 = jax.random.split(key, 3)

    # Small shapes: batch=2, input flattened from (4, 8) -> in_channels=32.
    batch, out_channels = 2, 2
    x = jax.random.normal(k_x, (batch, 4, 8), jnp.float32)
    in_channels = 4 * 8
    params = init_params(k_p, in_channels, out_channels)

    out = mlp_forward(x, params)
    out = jax.block_until_ready(out)
    ref = mlp_reference(x, params)
    assert out.shape == (batch, out_channels)
    assert jnp.allclose(out, ref, atol=1e-5, rtol=1e-5), "mismatch vs reference"

    # Second check: batch not a multiple of the tile size exercises padding path.
    x2 = jax.random.normal(k_x2, (10, 4, 8), jnp.float32)
    out2 = jax.block_until_ready(mlp_forward(x2, params))
    ref2 = mlp_reference(x2, params)
    assert out2.shape == (10, out_channels)
    assert jnp.allclose(out2, ref2, atol=1e-5, rtol=1e-5), "mismatch vs reference (padded)"

    print("KERNEL_OK")
</pallas_src>

<mosaic_0001>
module attributes {stable_mosaic.version = 11 : i64} {
  func.func @mlp_kernel(%arg0: i32, %arg1: memref<8x32xf32, #tpu.memory_space<vmem>>, %arg2: memref<32x12xf32, #tpu.memory_space<vmem>>, %arg3: memref<1x12xf32, #tpu.memory_space<vmem>>, %arg4: memref<12x4xf32, #tpu.memory_space<vmem>>, %arg5: memref<1x4xf32, #tpu.memory_space<vmem>>, %arg6: memref<4x2xf32, #tpu.memory_space<vmem>>, %arg7: memref<1x2xf32, #tpu.memory_space<vmem>>, %arg8: memref<8x2xf32, #tpu.memory_space<vmem>>) attributes {dimension_semantics = [#tpu.dimension_semantics<parallel>], iteration_bounds = array<i64: 1>, scalar_prefetch = 0 : i64, scratch_operands = 0 : i64, tpu.core_type = #tpu.core_type<tc>, window_params = [{transform_indices = @transform_0, window_bounds = array<i64: 8, 32>}, {pipeline_mode = #tpu.pipeline_mode<synchronous>, transform_indices = @transform_1, window_bounds = array<i64: 32, 12>}, {pipeline_mode = #tpu.pipeline_mode<synchronous>, transform_indices = @transform_2, window_bounds = array<i64: 1, 12>}, {pipeline_mode = #tpu.pipeline_mode<synchronous>, transform_indices = @transform_3, window_bounds = array<i64: 12, 4>}, {pipeline_mode = #tpu.pipeline_mode<synchronous>, transform_indices = @transform_4, window_bounds = array<i64: 1, 4>}, {pipeline_mode = #tpu.pipeline_mode<synchronous>, transform_indices = @transform_5, window_bounds = array<i64: 4, 2>}, {pipeline_mode = #tpu.pipeline_mode<synchronous>, transform_indices = @transform_6, window_bounds = array<i64: 1, 2>}, {transform_indices = @transform_7, window_bounds = array<i64: 8, 2>}]} {
    %c0 = arith.constant 0 : index
    %c0_0 = arith.constant 0 : index
    %0 = vector.load %arg1[%c0, %c0_0] : memref<8x32xf32, #tpu.memory_space<vmem>>, vector<8x32xf32>
    %c0_1 = arith.constant 0 : index
    %c0_2 = arith.constant 0 : index
    %1 = vector.load %arg2[%c0_1, %c0_2] : memref<32x12xf32, #tpu.memory_space<vmem>>, vector<32x12xf32>
    %cst = arith.constant dense<0.000000e+00> : vector<8x12xf32>
    %2 = tpu.matmul %0, %1, %cst {dimension_numbers = #tpu.dot_dimension_numbers<[1], [0], [0], [1], [0, 0, 1, 1], [], []>} : vector<8x32xf32>, vector<32x12xf32>, vector<8x12xf32> -> vector<8x12xf32>
    %c0_3 = arith.constant 0 : index
    %c0_4 = arith.constant 0 : index
    %3 = vector.load %arg3[%c0_3, %c0_4] : memref<1x12xf32, #tpu.memory_space<vmem>>, vector<1x12xf32>
    %4 = vector.broadcast %3 : vector<1x12xf32> to vector<8x12xf32>
    %5 = arith.addf %2, %4 : vector<8x12xf32>
    %cst_5 = arith.constant 0.000000e+00 : f32
    %6 = vector.broadcast %cst_5 : f32 to vector<8x12xf32>
    %7 = arith.maximumf %5, %6 : vector<8x12xf32>
    %c0_6 = arith.constant 0 : index
    %c0_7 = arith.constant 0 : index
    %8 = vector.load %arg4[%c0_6, %c0_7] : memref<12x4xf32, #tpu.memory_space<vmem>>, vector<12x4xf32>
    %cst_8 = arith.constant dense<0.000000e+00> : vector<8x4xf32>
    %9 = tpu.matmul %7, %8, %cst_8 {dimension_numbers = #tpu.dot_dimension_numbers<[1], [0], [0], [1], [0, 0, 1, 1], [], []>} : vector<8x12xf32>, vector<12x4xf32>, vector<8x4xf32> -> vector<8x4xf32>
    %c0_9 = arith.constant 0 : index
    %c0_10 = arith.constant 0 : index
    %10 = vector.load %arg5[%c0_9, %c0_10] : memref<1x4xf32, #tpu.memory_space<vmem>>, vector<1x4xf32>
    %11 = vector.broadcast %10 : vector<1x4xf32> to vector<8x4xf32>
    %12 = arith.addf %9, %11 : vector<8x4xf32>
    %cst_11 = arith.constant 0.000000e+00 : f32
    %13 = vector.broadcast %cst_11 : f32 to vector<8x4xf32>
    %14 = arith.maximumf %12, %13 : vector<8x4xf32>
    %c0_12 = arith.constant 0 : index
    %c0_13 = arith.constant 0 : index
    %15 = vector.load %arg6[%c0_12, %c0_13] : memref<4x2xf32, #tpu.memory_space<vmem>>, vector<4x2xf32>
    %cst_14 = arith.constant dense<0.000000e+00> : vector<8x2xf32>
    %16 = tpu.matmul %14, %15, %cst_14 {dimension_numbers = #tpu.dot_dimension_numbers<[1], [0], [0], [1], [0, 0, 1, 1], [], []>} : vector<8x4xf32>, vector<4x2xf32>, vector<8x2xf32> -> vector<8x2xf32>
    %c0_15 = arith.constant 0 : index
    %c0_16 = arith.constant 0 : index
    %17 = vector.load %arg7[%c0_15, %c0_16] : memref<1x2xf32, #tpu.memory_space<vmem>>, vector<1x2xf32>
    %18 = vector.broadcast %17 : vector<1x2xf32> to vector<8x2xf32>
    %19 = arith.addf %16, %18 : vector<8x2xf32>
    %c0_17 = arith.constant 0 : index
    %c0_18 = arith.constant 0 : index
    %20 = vector.load %arg8[%c0_17, %c0_18] : memref<8x2xf32, #tpu.memory_space<vmem>>, vector<8x2xf32>
    tpu.vector_store %arg8[%c0_17, %c0_18], %19 {strides = array<i32>} : memref<8x2xf32, #tpu.memory_space<vmem>>, vector<8x2xf32>,
    return
  }
  func.func @transform_0(%arg0: i32) -> (i32, i32) {
    %c0_i32 = arith.constant 0 : i32
    %c0_i32_0 = arith.constant 0 : i32
    return %arg0, %c0_i32 : i32, i32
  }
  func.func @transform_1(%arg0: i32) -> (i32, i32) {
    %c0_i32 = arith.constant 0 : i32
    %c0_i32_0 = arith.constant 0 : i32
    %c0_i32_1 = arith.constant 0 : i32
    return %c0_i32, %c0_i32_0 : i32, i32
  }
  func.func @transform_2(%arg0: i32) -> (i32, i32) {
    %c0_i32 = arith.constant 0 : i32
    %c0_i32_0 = arith.constant 0 : i32
    %c0_i32_1 = arith.constant 0 : i32
    return %c0_i32, %c0_i32_0 : i32, i32
  }
  func.func @transform_3(%arg0: i32) -> (i32, i32) {
    %c0_i32 = arith.constant 0 : i32
    %c0_i32_0 = arith.constant 0 : i32
    %c0_i32_1 = arith.constant 0 : i32
    return %c0_i32, %c0_i32_0 : i32, i32
  }
  func.func @transform_4(%arg0: i32) -> (i32, i32) {
    %c0_i32 = arith.constant 0 : i32
    %c0_i32_0 = arith.constant 0 : i32
    %c0_i32_1 = arith.constant 0 : i32
    return %c0_i32, %c0_i32_0 : i32, i32
  }
  func.func @transform_5(%arg0: i32) -> (i32, i32) {
    %c0_i32 = arith.constant 0 : i32
    %c0_i32_0 = arith.constant 0 : i32
    %c0_i32_1 = arith.constant 0 : i32
    return %c0_i32, %c0_i32_0 : i32, i32
  }
  func.func @transform_6(%arg0: i32) -> (i32, i32) {
    %c0_i32 = arith.constant 0 : i32
    %c0_i32_0 = arith.constant 0 : i32
    %c0_i32_1 = arith.constant 0 : i32
    return %c0_i32, %c0_i32_0 : i32, i32
  }
  func.func @transform_7(%arg0: i32) -> (i32, i32) {
    %c0_i32 = arith.constant 0 : i32
    %c0_i32_0 = arith.constant 0 : i32
    return %arg0, %c0_i32 : i32, i32
  }
}

</mosaic_0001>

<llo_original>
// kernel: tpu_custom_call.1
$region0: #{tpu_custom_call.1}
  #allocation0 [shape = 'u32[]', space=smem, size = 0x4, offset = 0x4, fixed_abs, tag = 'smem constant byte address 0x4 - core index']
  #allocation1 [shape = 'u32[144,128]{1,0:T(1,128)}', space=vmem, size = 0x12000, scoped, tag = 'internal scratch']
  %s0 = inlined_call_operand.vmem [shape: f32[8,32], index: 0, kind: input, shape index: {}]
  %s1 = inlined_call_operand.vmem [shape: f32[32,12], index: 1, kind: input, shape index: {}]
  %s2 = inlined_call_operand.vmem [shape: f32[1,12], index: 2, kind: input, shape index: {}]
  %s3 = inlined_call_operand.vmem [shape: f32[12,4], index: 3, kind: input, shape index: {}]
  %s4 = inlined_call_operand.vmem [shape: f32[1,4], index: 4, kind: input, shape index: {}]
  %s5 = inlined_call_operand.vmem [shape: f32[4,2], index: 5, kind: input, shape index: {}]
  %s6 = inlined_call_operand.vmem [shape: f32[1,2], index: 6, kind: input, shape index: {}]
  %s7 = inlined_call_operand.vmem [shape: f32[8,2], index: 7, kind: output, shape index: {}]
  %s8 = sld [smem:[#allocation0]]
  $region38: #{tpu_custom_call.1} parent=0
    _
  %s10 = ssub.s32 1, %s8
  %s11 = scalar_select 0, %s10, %s8
  // Predicated region
  $region2: #{tpu_custom_call.1} parent=0 // pred_check
    _
  $region3: #{tpu_custom_call.1} parent=0 // pred_check_branch
    %13 = sbr.rel (0) target = $region5
  $region4: #{tpu_custom_call.1} parent=0 // pred_region
    _
  $region5: #{tpu_custom_call.1} parent=0 // pred_fallthru
    _
  // Predicated region
  $region6: #{tpu_custom_call.1} parent=0 // pred_check
    _
  $region7: #{tpu_custom_call.1} parent=0 // pred_check_branch
    %15 = sbr.rel (0) target = $region9
  $region8: #{tpu_custom_call.1} parent=0 // pred_region
    _
  $region9: #{tpu_custom_call.1} parent=0 // pred_fallthru
    _
  // Predicated region
  $region10: #{tpu_custom_call.1} parent=0 // pred_check
    _
  $region11: #{tpu_custom_call.1} parent=0 // pred_check_branch
    %17 = sbr.rel (0) target = $region13
  $region12: #{tpu_custom_call.1} parent=0 // pred_region
    _
  $region13: #{tpu_custom_call.1} parent=0 // pred_fallthru
    _
  // Predicated region
  $region14: #{tpu_custom_call.1} parent=0 // pred_check
    _
  $region15: #{tpu_custom_call.1} parent=0 // pred_check_branch
    %19 = sbr.rel (0) target = $region17
  $region16: #{tpu_custom_call.1} parent=0 // pred_region
    _
  $region17: #{tpu_custom_call.1} parent=0 // pred_fallthru
    _
  // Predicated region
  $region18: #{tpu_custom_call.1} parent=0 // pred_check
    _
  $region19: #{tpu_custom_call.1} parent=0 // pred_check_branch
    %21 = sbr.rel (0) target = $region21
  $region20: #{tpu_custom_call.1} parent=0 // pred_region
    _
  $region21: #{tpu_custom_call.1} parent=0 // pred_fallthru
    _
  // Predicated region
  $region22: #{tpu_custom_call.1} parent=0 // pred_check
    _
  $region23: #{tpu_custom_call.1} parent=0 // pred_check_branch
    %23 = sbr.rel (0) target = $region25
  $region24: #{tpu_custom_call.1} parent=0 // pred_region
    _
  $region25: #{tpu_custom_call.1} parent=0 // pred_fallthru
    _
  // Predicated region
  $region26: #{tpu_custom_call.1} parent=0 // pred_check
    _
  $region27: #{tpu_custom_call.1} parent=0 // pred_check_branch
    %25 = sbr.rel (0) target = $region29
  $region28: #{tpu_custom_call.1} parent=0 // pred_region
    _
  $region29: #{tpu_custom_call.1} parent=0 // pred_fallthru
    _
  %v26 = vld [vmem:[%s0] sm:$0xff]
  %v27 = vld [vmem:[%s1] sm:$0xff]
  %v28 = vld [vmem:[%s1 + $0x8] sm:$0xff]
  %v29 = vld [vmem:[%s1 + $0x10] sm:$0xff]
  %v30 = vld [vmem:[%s1 + $0x18] sm:$0xff]
  %v31 = vld [vmem:[%s2] sm:$0x1]
  %v33 = vlaneseq
  %v34 = vshrl.u32 %v33, 7
  %v35 = vsub.s32 0, %v34
  %v36 = vrot.slane %v31, %v35
  %vm38 = vcmask 261120
  %v40 = vsel %vm38, %v26, 0
  %42 = vmatprep.subr.mxu0 0.0
  %43 = vmatpush1.msra.mxu0 0.0
  %44 = vmatprep.subr.mxu0 0.0
  %45 = vmatpush1.msra.mxu0 0.0
  %46 = vmatprep.subr.mxu0 0.0
  %47 = vmatpush1.msra.mxu0 0.0
  %48 = vmatprep.subr.mxu0 0.0
  %49 = vmatpush1.msra.mxu0 0.0
  %50 = vmatprep.subr.mxu0 0.0
  %51 = vmatpush1.msra.mxu0 0.0
  %52 = vmatprep.subr.mxu0 0.0
  %53 = vmatpush1.msra.mxu0 0.0
  %54 = vmatprep.subr.mxu0 0.0
  %55 = vmatpush1.msra.mxu0 0.0
  %56 = vmatprep.subr.mxu0 0.0
  %57 = vmatpush1.msra.mxu0 0.0
  %58 = vmatprep.subr.mxu0 0.0
  %59 = vmatpush1.msra.mxu0 0.0
  %60 = vmatprep.subr.mxu0 0.0
  %61 = vmatpush1.msra.mxu0 0.0
  %62 = vmatprep.subr.mxu0 0.0
  %63 = vmatpush1.msra.mxu0 0.0
  %64 = vmatprep.subr.mxu0 0.0
  %65 = vmatpush1.msra.mxu0 0.0
  %66 = vmatprep.subr.mxu0 0.0
  %67 = vmatpush1.msra.mxu0 %v30
  %68 = vmatprep.subr.mxu0 0.0
  %69 = vmatpush1.msra.mxu0 %v29
  %70 = vmatprep.subr.mxu0 0.0
  %71 = vmatpush1.msra.mxu0 %v28
  %72 = vmatprep.subr.mxu0 0.0
  %73 = vmatpush1.msra.mxu0 %v27
  %74 = vmatprep.subr.mxu0 0.0
  %75 = vmatpush2.msra.mxu0 0.0
  %76 = vmatprep.subr.mxu0 0.0
  %77 = vmatpush2.msra.mxu0 0.0
  %78 = vmatprep.subr.mxu0 0.0
  %79 = vmatpush2.msra.mxu0 0.0
  %80 = vmatprep.subr.mxu0 0.0
  %81 = vmatpush2.msra.mxu0 0.0
  %82 = vmatprep.subr.mxu0 0.0
  %83 = vmatpush2.msra.mxu0 0.0
  %84 = vmatprep.subr.mxu0 0.0
  %85 = vmatpush2.msra.mxu0 0.0
  %86 = vmatprep.subr.mxu0 0.0
  %87 = vmatpush2.msra.mxu0 0.0
  %88 = vmatprep.subr.mxu0 0.0
  %89 = vmatpush2.msra.mxu0 0.0
  %90 = vmatprep.subr.mxu0 0.0
  %91 = vmatpush2.msra.mxu0 0.0
  %92 = vmatprep.subr.mxu0 0.0
  %93 = vmatpush2.msra.mxu0 0.0
  %94 = vmatprep.subr.mxu0 0.0
  %95 = vmatpush2.msra.mxu0 0.0
  %96 = vmatprep.subr.mxu0 0.0
  %97 = vmatpush2.msra.mxu0 0.0
  %98 = vmatprep.subr.mxu0 0.0
  %99 = vmatpush2.msra.mxu0 0.0
  %100 = vmatprep.subr.mxu0 0.0
  %101 = vmatpush2.msra.mxu0 0.0
  %102 = vmatprep.subr.mxu0 0.0
  %103 = vmatpush2.msra.mxu0 0.0
  %104 = vmatprep.subr.mxu0 0.0
  %105 = vmatpush2.msra.mxu0 0.0
  %106 = vmatprep.mubr.f32.mxu0 0.0
  %107 = vmatmul.mubr.f32.gmra.mxu0 %v40
  %v108 = vpop.f32.mrf.mxu0
  %v109 = vadd.f32 %v36, %v108
  %v110 = vpop.f32.mrf.mxu0
  %111 = vdwg.mxu0
  %v112 = vmax.f32 %v109, 0.0
  %v113 = vld [vmem:[%s3] sm:$0xff]
  %v114 = vld [vmem:[%s3 + $0x8] sm:$0xf]
  %v115 = vld [vmem:[%s4] sm:$0x1]
  %v117 = vlaneseq
  %v118 = vshrl.u32 %v117, 7
  %v119 = vsub.s32 0, %v118
  %v120 = vrot.slane %v115, %v119
  %vm122 = vcmask 97280
  %v124 = vsel %vm122, %v112, 0
  %vm126 = vcmask 1043456
  %v128 = vsel %vm126, %v114, 0
  %130 = vmatprep.subr.mxu0 0.0
  %131 = vmatpush1.msra.mxu0 0.0
  %132 = vmatprep.subr.mxu0 0.0
  %133 = vmatpush1.msra.mxu0 0.0
  %134 = vmatprep.subr.mxu0 0.0
  %135 = vmatpush1.msra.mxu0 0.0
  %136 = vmatprep.subr.mxu0 0.0
  %137 = vmatpush1.msra.mxu0 0.0
  %138 = vmatprep.subr.mxu0 0.0
  %139 = vmatpush1.msra.mxu0 0.0
  %140 = vmatprep.subr.mxu0 0.0
  %141 = vmatpush1.msra.mxu0 0.0
  %142 = vmatprep.subr.mxu0 0.0
  %143 = vmatpush1.msra.mxu0 0.0
  %144 = vmatprep.subr.mxu0 0.0
  %145 = vmatpush1.msra.mxu0 0.0
  %146 = vmatprep.subr.mxu0 0.0
  %147 = vmatpush1.msra.mxu0 0.0
  %148 = vmatprep.subr.mxu0 0.0
  %149 = vmatpush1.msra.mxu0 0.0
  %150 = vmatprep.subr.mxu0 0.0
  %151 = vmatpush1.msra.mxu0 0.0
  %152 = vmatprep.subr.mxu0 0.0
  %153 = vmatpush1.msra.mxu0 0.0
  %154 = vmatprep.subr.mxu0 0.0
  %155 = vmatpush1.msra.mxu0 0.0
  %156 = vmatprep.subr.mxu0 0.0
  %157 = vmatpush1.msra.mxu0 0.0
  %158 = vmatprep.subr.mxu0 0.0
  %159 = vmatpush1.msra.mxu0 %v128
  %160 = vmatprep.subr.mxu0 0.0
  %161 = vmatpush1.msra.mxu0 %v113
  %162 = vmatprep.subr.mxu0 0.0
  %163 = vmatpush2.msra.mxu0 0.0
  %164 = vmatprep.subr.mxu0 0.0
  %165 = vmatpush2.msra.mxu0 0.0
  %166 = vmatprep.subr.mxu0 0.0
  %167 = vmatpush2.msra.mxu0 0.0
  %168 = vmatprep.subr.mxu0 0.0
  %169 = vmatpush2.msra.mxu0 0.0
  %170 = vmatprep.subr.mxu0 0.0
  %171 = vmatpush2.msra.mxu0 0.0
  %172 = vmatprep.subr.mxu0 0.0
  %173 = vmatpush2.msra.mxu0 0.0
  %174 = vmatprep.subr.mxu0 0.0
  %175 = vmatpush2.msra.mxu0 0.0
  %176 = vmatprep.subr.mxu0 0.0
  %177 = vmatpush2.msra.mxu0 0.0
  %178 = vmatprep.subr.mxu0 0.0
  %179 = vmatpush2.msra.mxu0 0.0
  %180 = vmatprep.subr.mxu0 0.0
  %181 = vmatpush2.msra.mxu0 0.0
  %182 = vmatprep.subr.mxu0 0.0
  %183 = vmatpush2.msra.mxu0 0.0
  %184 = vmatprep.subr.mxu0 0.0
  %185 = vmatpush2.msra.mxu0 0.0
  %186 = vmatprep.subr.mxu0 0.0
  %187 = vmatpush2.msra.mxu0 0.0
  %188 = vmatprep.subr.mxu0 0.0
  %189 = vmatpush2.msra.mxu0 0.0
  %190 = vmatprep.subr.mxu0 0.0
  %191 = vmatpush2.msra.mxu0 0.0
  %192 = vmatprep.subr.mxu0 0.0
  %193 = vmatpush2.msra.mxu0 0.0
  %194 = vmatprep.mubr.f32.mxu0 0.0
  %195 = vmatmul.mubr.f32.gmra.mxu0 %v124
  %v196 = vpop.f32.mrf.mxu0
  %v197 = vadd.f32 %v120, %v196
  %v198 = vpop.f32.mrf.mxu0
  %199 = vdwg.mxu0
  %v200 = vmax.f32 %v197, 0.0
  %v201 = vld [vmem:[%s5] sm:$0xf]
  %v202 = vld [vmem:[%s6] sm:$0x1]
  %v204 = vlaneseq
  %v205 = vshrl.u32 %v204, 7
  %v206 = vsub.s32 0, %v205
  %v207 = vrot.slane %v202, %v206
  %vm209 = vcmask 31744
  %v211 = vsel %vm209, %v200, 0
  %v214 = vsel %vm126, %v201, 0
  %216 = vmatprep.subr.mxu0 0.0
  %217 = vmatpush1.msra.mxu0 0.0
  %218 = vmatprep.subr.mxu0 0.0
  %219 = vmatpush1.msra.mxu0 0.0
  %220 = vmatprep.subr.mxu0 0.0
  %221 = vmatpush1.msra.mxu0 0.0
  %222 = vmatprep.subr.mxu0 0.0
  %223 = vmatpush1.msra.mxu0 0.0
  %224 = vmatprep.subr.mxu0 0.0
  %225 = vmatpush1.msra.mxu0 0.0
  %226 = vmatprep.subr.mxu0 0.0
  %227 = vmatpush1.msra.mxu0 0.0
  %228 = vmatprep.subr.mxu0 0.0
  %229 = vmatpush1.msra.mxu0 0.0
  %230 = vmatprep.subr.mxu0 0.0
  %231 = vmatpush1.msra.mxu0 0.0
  %232 = vmatprep.subr.mxu0 0.0
  %233 = vmatpush1.msra.mxu0 0.0
  %234 = vmatprep.subr.mxu0 0.0
  %235 = vmatpush1.msra.mxu0 0.0
  %236 = vmatprep.subr.mxu0 0.0
  %237 = vmatpush1.msra.mxu0 0.0
  %238 = vmatprep.subr.mxu0 0.0
  %239 = vmatpush1.msra.mxu0 0.0
  %240 = vmatprep.subr.mxu0 0.0
  %241 = vmatpush1.msra.mxu0 0.0
  %242 = vmatprep.subr.mxu0 0.0
  %243 = vmatpush1.msra.mxu0 0.0
  %244 = vmatprep.subr.mxu0 0.0
  %245 = vmatpush1.msra.mxu0 0.0
  %246 = vmatprep.subr.mxu0 0.0
  %247 = vmatpush1.msra.mxu0 %v214
  %248 = vmatprep.subr.mxu0 0.0
  %249 = vmatpush2.msra.mxu0 0.0
  %250 = vmatprep.subr.mxu0 0.0
  %251 = vmatpush2.msra.mxu0 0.0
  %252 = vmatprep.subr.mxu0 0.0
  %253 = vmatpush2.msra.mxu0 0.0
  %254 = vmatprep.subr.mxu0 0.0
  %255 = vmatpush2.msra.mxu0 0.0
  %256 = vmatprep.subr.mxu0 0.0
  %257 = vmatpush2.msra.mxu0 0.0
  %258 = vmatprep.subr.mxu0 0.0
  %259 = vmatpush2.msra.mxu0 0.0
  %260 = vmatprep.subr.mxu0 0.0
  %261 = vmatpush2.msra.mxu0 0.0
  %262 = vmatprep.subr.mxu0 0.0
  %263 = vmatpush2.msra.mxu0 0.0
  %264 = vmatprep.subr.mxu0 0.0
  %265 = vmatpush2.msra.mxu0 0.0
  %266 = vmatprep.subr.mxu0 0.0
  %267 = vmatpush2.msra.mxu0 0.0
  %268 = vmatprep.subr.mxu0 0.0
  %269 = vmatpush2.msra.mxu0 0.0
  %270 = vmatprep.subr.mxu0 0.0
  %271 = vmatpush2.msra.mxu0 0.0
  %272 = vmatprep.subr.mxu0 0.0
  %273 = vmatpush2.msra.mxu0 0.0
  %274 = vmatprep.subr.mxu0 0.0
  %275 = vmatpush2.msra.mxu0 0.0
  %276 = vmatprep.subr.mxu0 0.0
  %277 = vmatpush2.msra.mxu0 0.0
  %278 = vmatprep.subr.mxu0 0.0
  %279 = vmatpush2.msra.mxu0 0.0
  %280 = vmatprep.mubr.f32.mxu0 0.0
  %281 = vmatmul.mubr.f32.gmra.mxu0 %v211
  %v282 = vpop.f32.mrf.mxu0
  %v283 = vadd.f32 %v207, %v282
  %v284 = vpop.f32.mrf.mxu0
  %285 = vdwg.mxu0
  %vm286 = vcmask 15360
  %287 = vst.msk [vmem:[%s7] sm:$0xff] %vm286, %v283
  // Predicated region
  $region30: #{tpu_custom_call.1} parent=0 // pred_check
    _
  $region31: #{tpu_custom_call.1} parent=0 // pred_check_branch
    %289 = sbr.rel (0) target = $region33
  $region32: #{tpu_custom_call.1} parent=0 // pred_region
    _
  $region33: #{tpu_custom_call.1} parent=0 // pred_fallthru
    _
  // Predicated region
  $region34: #{tpu_custom_call.1} parent=0 // pred_check
    _
  $region35: #{tpu_custom_call.1} parent=0 // pred_check_branch
    %291 = sbr.rel (0) target = $region37
  $region36: #{tpu_custom_call.1} parent=0 // pred_region
    _
  $region37: #{tpu_custom_call.1} parent=0 // pred_fallthru
    _

</llo_original>
